<compile_context>
chip_gen: v7x
topology: tpu7x:2x2x1
jax: 0.10.0
libtpu: 0.0.40
codegen_flags: <defaults>
</compile_context>

<pallas_src>
import jax
import jax.numpy as jnp
from jax.experimental import pallas as pl
from jax.experimental.pallas import tpu as pltpu

LANE = 128
SUBLANE = 8


def _round_up(n, m):
    return ((n + m - 1) // m) * m


def vdb_kernel(x_ref, eps_ref, w1_ref, w23_ref, w4_ref, misc_ref, out_ref):
    """One batch-tile of the VDB forward pass.

    Per-tile shapes:
      x_ref    (TB, IN)
      eps_ref  (TB, Z)
      w1_ref   (IN, Hp)      padded columns are zero
      w23_ref  (Hp, OUT_W)   cols [0,Z)=fc2, [Z,2Z)=fc3, rest zero
      w4_ref   (Z,  Hp)
      misc_ref (8,  MISC_W)  row0=b1, row1=b2|b3, row2=b4, row3=fc5 weight row, row4=[b5,0..]
      out_ref  (TB, OUT_W)   packed output [mu | logvar | prob | 0...]
    """
    TB = x_ref.shape[0]
    Z = eps_ref.shape[-1]
    Hp = w1_ref.shape[-1]
    OUT_W = out_ref.shape[-1]

    x = x_ref[...]
    eps = eps_ref[...]
    misc = misc_ref[...]
    b1 = misc[0:1, :Hp]
    b23 = misc[1:2, :OUT_W]
    b4 = misc[2:3, :Hp]
    w5r = misc[3:4, :Hp]
    b5 = misc[4:5, 0:1]

    # encoder: h1 = tanh(fc1(x))   (padded columns stay tanh(0 + 0) = 0)
    h1 = jnp.tanh(jnp.dot(x, w1_ref[...], preferred_element_type=jnp.float32) + b1)

    # fused fc2|fc3: enc[:, :Z] = mu, enc[:, Z:2Z] = logvar, padded columns = 0
    enc = jnp.dot(h1, w23_ref[...], preferred_element_type=jnp.float32) + b23

    mu = enc[:, :Z]
    logvar = enc[:, Z:2 * Z]

    # reparameterize: z = mu + exp(logvar / 2) * eps
    z = mu + jnp.exp(logvar * 0.5) * eps

    # discriminator: h2 = tanh(fc4(z))
    h2 = jnp.tanh(jnp.dot(z, w4_ref[...], preferred_element_type=jnp.float32) + b4)

    # fc5: width-1 output -> VPU multiply + lane reduction (avoid N=1 MXU matmul)
    logit = jnp.sum(h2 * w5r, axis=-1, keepdims=True) + b5
    prob = jax.nn.sigmoid(logit)

    # lane-dense packed store: column 2Z holds prob, columns [0, 2Z) hold mu|logvar
    sel = jax.lax.broadcasted_iota(jnp.int32, (TB, OUT_W), 1) == (2 * Z)
    out_ref[...] = jnp.where(sel, jnp.broadcast_to(prob, (TB, OUT_W)), enc)


def pack_vdb_params(params):
    """Pack the 10 Linear weights/biases into 4 lane-padded VMEM-resident slabs."""
    w1t, b1 = params["w1t"], params["b1"]
    w2t, b2 = params["w2t"], params["b2"]
    w3t, b3 = params["w3t"], params["b3"]
    w4t, b4 = params["w4t"], params["b4"]
    w5t, b5 = params["w5t"], params["b5"]

    IN, H = w1t.shape
    Z = w2t.shape[1]
    Hp = _round_up(H, LANE)
    OUT_W = _round_up(2 * Z + 1, LANE)
    MISC_W = max(Hp, OUT_W)
    f32 = jnp.float32

    w1p = jnp.zeros((IN, Hp), f32).at[:, :H].set(w1t)
    w23p = (jnp.zeros((Hp, OUT_W), f32)
            .at[:H, :Z].set(w2t)
            .at[:H, Z:2 * Z].set(w3t))
    w4p = jnp.zeros((Z, Hp), f32).at[:, :H].set(w4t)
    misc = (jnp.zeros((SUBLANE, MISC_W), f32)
            .at[0, :H].set(b1[0])
            .at[1, :Z].set(b2[0])
            .at[1, Z:2 * Z].set(b3[0])
            .at[2, :H].set(b4[0])
            .at[3, :H].set(w5t[:, 0])
            .at[4, 0].set(b5[0, 0]))

    return dict(w1p=w1p, w23p=w23p, w4p=w4p, misc=misc,
                num_inputs=IN, hidden=H, z=Z, hp=Hp, out_w=OUT_W, misc_w=MISC_W)


def vdb_forward(x, packed, eps, *, batch_tile=512):
    """Full VDB forward pass in one Pallas kernel, tiled & pipelined over the batch.

    Returns (prob, mu, logvar) exactly like VDB.forward.
    """
    B, IN = x.shape
    Z = packed["z"]
    Hp = packed["hp"]
    OUT_W = packed["out_w"]
    MISC_W = packed["misc_w"]
    assert eps.shape == (B, Z)

    # Batch tile: 512 rows (f32) for large batches, else the whole (8-row padded) batch.
    TB = batch_tile if B >= batch_tile else _round_up(B, SUBLANE)
    B_pad = _round_up(B, TB)

    xp = jnp.pad(x.astype(jnp.float32), ((0, B_pad - B), (0, 0)))
    ep = jnp.pad(eps.astype(jnp.float32), ((0, B_pad - B), (0, 0)))

    out = pl.pallas_call(
        vdb_kernel,
        out_shape=jax.ShapeDtypeStruct((B_pad, OUT_W), jnp.float32),
        grid=(B_pad // TB,),
        in_specs=[
            pl.BlockSpec((TB, IN), lambda i: (i, 0)),           # x: tiled over batch
            pl.BlockSpec((TB, Z), lambda i: (i, 0)),            # eps: tiled over batch
            pl.BlockSpec((IN, Hp), lambda i: (0, 0)),           # weights: resident in VMEM
            pl.BlockSpec((Hp, OUT_W), lambda i: (0, 0)),
            pl.BlockSpec((Z, Hp), lambda i: (0, 0)),
            pl.BlockSpec((SUBLANE, MISC_W), lambda i: (0, 0)),
        ],
        out_specs=pl.BlockSpec((TB, OUT_W), lambda i: (i, 0)),
        compiler_params=pltpu.CompilerParams(
            dimension_semantics=("parallel",),
            vmem_limit_bytes=32 * 1024 * 1024,
        ),
    )(xp, ep, packed["w1p"], packed["w23p"], packed["w4p"], packed["misc"])

    mu = out[:B, :Z]
    logvar = out[:B, Z:2 * Z]
    prob = out[:B, 2 * Z:2 * Z + 1]
    return prob, mu, logvar


def init_vdb_params(key, num_inputs, hidden_size, z_size):
    """Mimics PyTorch nn.Linear default init (uniform(+-1/sqrt(fan_in))) plus the
    VDB-specific fc5.weight *= 0.1 and fc5.bias = 0. Weights stored transposed (in, out)."""
    def linear(key, fan_in, fan_out):
        kw, kb = jax.random.split(key)
        bound = 1.0 / jnp.sqrt(jnp.float32(fan_in))
        w_t = jax.random.uniform(kw, (fan_in, fan_out), jnp.float32, -bound, bound)
        b = jax.random.uniform(kb, (1, fan_out), jnp.float32, -bound, bound)
        return w_t, b

    k1, k2, k3, k4, k5 = jax.random.split(key, 5)
    w1t, b1 = linear(k1, num_inputs, hidden_size)
    w2t, b2 = linear(k2, hidden_size, z_size)
    w3t, b3 = linear(k3, hidden_size, z_size)
    w4t, b4 = linear(k4, z_size, hidden_size)
    w5t, b5 = linear(k5, hidden_size, 1)
    w5t = w5t * 0.1          # self.fc5.weight.data.mul_(0.1)
    b5 = b5 * 0.0            # self.fc5.bias.data.mul_(0.0)
    return dict(w1t=w1t, b1=b1, w2t=w2t, b2=b2, w3t=w3t, b3=b3,
                w4t=w4t, b4=b4, w5t=w5t, b5=b5)


def vdb_reference(x, params, eps):
    """Pure-JAX reference for correctness checking."""
    h1 = jnp.tanh(x @ params["w1t"] + params["b1"])
    mu = h1 @ params["w2t"] + params["b2"]
    logvar = h1 @ params["w3t"] + params["b3"]
    z = mu + jnp.exp(logvar / 2.0) * eps
    h2 = jnp.tanh(z @ params["w4t"] + params["b4"])
    prob = jax.nn.sigmoid(h2 @ params["w5t"] + params["b5"])
    return prob, mu, logvar


if __name__ == "__main__":
    num_inputs, hidden_size, z_size = 16, 32, 8

    root = jax.random.PRNGKey(0)
    k_params, k_data, _ = jax.random.split(root, 3)
    params = init_vdb_params(k_params, num_inputs, hidden_size, z_size)
    packed = pack_vdb_params(params)

    ok = True
    for batch in (8, 5):  # 8: aligned batch; 5: ragged batch exercising the padding path
        kx, ke = jax.random.split(jax.random.fold_in(k_data, batch))
        x = jax.random.normal(kx, (batch, num_inputs), jnp.float32)
        eps = jax.random.normal(ke, (batch, z_size), jnp.float32)

        prob, mu, logvar = vdb_forward(x, packed, eps)
        jax.block_until_ready((prob, mu, logvar))

        prob_r, mu_r, logvar_r = vdb_reference(x, params, eps)
        assert prob.shape == (batch, 1)
        assert mu.shape == (batch, z_size) and logvar.shape == (batch, z_size)
        ok &= bool(jnp.allclose(prob, prob_r, atol=1e-5, rtol=1e-5))
        ok &= bool(jnp.allclose(mu, mu_r, atol=1e-5, rtol=1e-5))
        ok &= bool(jnp.allclose(logvar, logvar_r, atol=1e-5, rtol=1e-5))

    assert ok, "Pallas VDB kernel does not match the pure-JAX reference"
    print("KERNEL_OK")
</pallas_src>

<mosaic_0001>
module attributes {stable_mosaic.version = 11 : i64} {
  func.func @vdb_kernel(%arg0: i32, %arg1: memref<8x16xf32, #tpu.memory_space<vmem>>, %arg2: memref<8x8xf32, #tpu.memory_space<vmem>>, %arg3: memref<16x128xf32, #tpu.memory_space<vmem>>, %arg4: memref<128x128xf32, #tpu.memory_space<vmem>>, %arg5: memref<8x128xf32, #tpu.memory_space<vmem>>, %arg6: memref<8x128xf32, #tpu.memory_space<vmem>>, %arg7: memref<8x128xf32, #tpu.memory_space<vmem>>) attributes {dimension_semantics = [#tpu.dimension_semantics<parallel>], iteration_bounds = array<i64: 1>, scalar_prefetch = 0 : i64, scratch_operands = 0 : i64, tpu.core_type = #tpu.core_type<tc>, window_params = [{transform_indices = @transform_0, window_bounds = array<i64: 8, 16>}, {transform_indices = @transform_1, window_bounds = array<i64: 8, 8>}, {pipeline_mode = #tpu.pipeline_mode<synchronous>, transform_indices = @transform_2, window_bounds = array<i64: 16, 128>}, {pipeline_mode = #tpu.pipeline_mode<synchronous>, transform_indices = @transform_3, window_bounds = array<i64: 128, 128>}, {pipeline_mode = #tpu.pipeline_mode<synchronous>, transform_indices = @transform_4, window_bounds = array<i64: 8, 128>}, {pipeline_mode = #tpu.pipeline_mode<synchronous>, transform_indices = @transform_5, window_bounds = array<i64: 8, 128>}, {transform_indices = @transform_6, window_bounds = array<i64: 8, 128>}]} {
    %c0 = arith.constant 0 : index
    %c0_0 = arith.constant 0 : index
    %0 = vector.load %arg1[%c0, %c0_0] : memref<8x16xf32, #tpu.memory_space<vmem>>, vector<8x16xf32>
    %c0_1 = arith.constant 0 : index
    %c0_2 = arith.constant 0 : index
    %1 = vector.load %arg2[%c0_1, %c0_2] : memref<8x8xf32, #tpu.memory_space<vmem>>, vector<8x8xf32>
    %c0_3 = arith.constant 0 : index
    %c0_4 = arith.constant 0 : index
    %2 = vector.load %arg6[%c0_3, %c0_4] : memref<8x128xf32, #tpu.memory_space<vmem>>, vector<8x128xf32>
    %3 = vector.extract_strided_slice %2 {offsets = [0, 0], sizes = [1, 128], strides = [1, 1]} : vector<8x128xf32> to vector<1x128xf32>
    %4 = vector.extract_strided_slice %2 {offsets = [1, 0], sizes = [1, 128], strides = [1, 1]} : vector<8x128xf32> to vector<1x128xf32>
    %5 = vector.extract_strided_slice %2 {offsets = [2, 0], sizes = [1, 128], strides = [1, 1]} : vector<8x128xf32> to vector<1x128xf32>
    %6 = vector.extract_strided_slice %2 {offsets = [3, 0], sizes = [1, 128], strides = [1, 1]} : vector<8x128xf32> to vector<1x128xf32>
    %7 = vector.extract_strided_slice %2 {offsets = [4, 0], sizes = [1, 1], strides = [1, 1]} : vector<8x128xf32> to vector<1x1xf32>
    %c0_5 = arith.constant 0 : index
    %c0_6 = arith.constant 0 : index
    %8 = vector.load %arg3[%c0_5, %c0_6] : memref<16x128xf32, #tpu.memory_space<vmem>>, vector<16x128xf32>
    %cst = arith.constant dense<0.000000e+00> : vector<8x128xf32>
    %9 = tpu.matmul %0, %8, %cst {dimension_numbers = #tpu.dot_dimension_numbers<[1], [0], [0], [1], [0, 0, 1, 1], [], []>} : vector<8x16xf32>, vector<16x128xf32>, vector<8x128xf32> -> vector<8x128xf32>
    %10 = vector.broadcast %3 : vector<1x128xf32> to vector<8x128xf32>
    %11 = arith.addf %9, %10 : vector<8x128xf32>
    %12 = math.tanh %11 : vector<8x128xf32>
    %c0_7 = arith.constant 0 : index
    %c0_8 = arith.constant 0 : index
    %13 = vector.load %arg4[%c0_7, %c0_8] : memref<128x128xf32, #tpu.memory_space<vmem>>, vector<128x128xf32>
    %cst_9 = arith.constant dense<0.000000e+00> : vector<8x128xf32>
    %14 = tpu.matmul %12, %13, %cst_9 {dimension_numbers = #tpu.dot_dimension_numbers<[1], [0], [0], [1], [0, 0, 1, 1], [], []>} : vector<8x128xf32>, vector<128x128xf32>, vector<8x128xf32> -> vector<8x128xf32>
    %15 = vector.broadcast %4 : vector<1x128xf32> to vector<8x128xf32>
    %16 = arith.addf %14, %15 : vector<8x128xf32>
    %17 = vector.extract_strided_slice %16 {offsets = [0, 0], sizes = [8, 8], strides = [1, 1]} : vector<8x128xf32> to vector<8x8xf32>
    %18 = vector.extract_strided_slice %16 {offsets = [0, 8], sizes = [8, 8], strides = [1, 1]} : vector<8x128xf32> to vector<8x8xf32>
    %cst_10 = arith.constant 5.000000e-01 : f32
    %19 = vector.broadcast %cst_10 : f32 to vector<8x8xf32>
    %20 = arith.mulf %18, %19 : vector<8x8xf32>
    %21 = math.exp %20 : vector<8x8xf32>
    %22 = arith.mulf %21, %1 : vector<8x8xf32>
    %23 = arith.addf %17, %22 : vector<8x8xf32>
    %c0_11 = arith.constant 0 : index
    %c0_12 = arith.constant 0 : index
    %24 = vector.load %arg5[%c0_11, %c0_12] : memref<8x128xf32, #tpu.memory_space<vmem>>, vector<8x128xf32>
    %cst_13 = arith.constant dense<0.000000e+00> : vector<8x128xf32>
    %25 = tpu.matmul %23, %24, %cst_13 {dimension_numbers = #tpu.dot_dimension_numbers<[1], [0], [0], [1], [0, 0, 1, 1], [], []>} : vector<8x8xf32>, vector<8x128xf32>, vector<8x128xf32> -> vector<8x128xf32>
    %26 = vector.broadcast %5 : vector<1x128xf32> to vector<8x128xf32>
    %27 = arith.addf %25, %26 : vector<8x128xf32>
    %28 = math.tanh %27 : vector<8x128xf32>
    %29 = vector.broadcast %6 : vector<1x128xf32> to vector<8x128xf32>
    %30 = arith.mulf %28, %29 : vector<8x128xf32>
    %cst_14 = arith.constant dense<0.000000e+00> : vector<8xf32>
    %31 = vector.multi_reduction <add>, %30, %cst_14 [1] : vector<8x128xf32> to vector<8xf32>
    %32 = vector.shape_cast %31 : vector<8xf32> to vector<8x1xf32>
    %33 = vector.broadcast %7 : vector<1x1xf32> to vector<8x1xf32>
    %34 = arith.addf %32, %33 : vector<8x1xf32>
    %35 = arith.negf %34 : vector<8x1xf32>
    %36 = math.exp %35 : vector<8x1xf32>
    %cst_15 = arith.constant 1.000000e+00 : f32
    %37 = vector.broadcast %cst_15 : f32 to vector<8x1xf32>
    %38 = arith.addf %37, %36 : vector<8x1xf32>
    %39 = arith.divf %37, %38 : vector<8x1xf32>
    %40 = tpu.iota {dimensions = array<i32: 1>} : vector<8x128xi32>
    %c16_i32 = arith.constant 16 : i32
    %41 = vector.broadcast %c16_i32 : i32 to vector<8x128xi32>
    %42 = arith.cmpi eq, %40, %41 : vector<8x128xi32>
    %43 = vector.shape_cast %39 : vector<8x1xf32> to vector<8x1xf32>
    %44 = vector.broadcast %43 : vector<8x1xf32> to vector<8x128xf32>
    %45 = arith.select %42, %44, %16 : vector<8x128xi1>, vector<8x128xf32>
    %c0_16 = arith.constant 0 : index
    %c0_17 = arith.constant 0 : index
    %46 = vector.load %arg7[%c0_16, %c0_17] : memref<8x128xf32, #tpu.memory_space<vmem>>, vector<8x128xf32>
    tpu.vector_store %arg7[%c0_16, %c0_17], %45 {strides = array<i32>} : memref<8x128xf32, #tpu.memory_space<vmem>>, vector<8x128xf32>,
    return
  }
  func.func @transform_0(%arg0: i32) -> (i32, i32) {
    %c0_i32 = arith.constant 0 : i32
    %c0_i32_0 = arith.constant 0 : i32
    return %arg0, %c0_i32 : i32, i32
  }
  func.func @transform_1(%arg0: i32) -> (i32, i32) {
    %c0_i32 = arith.constant 0 : i32
    %c0_i32_0 = arith.constant 0 : i32
    return %arg0, %c0_i32 : i32, i32
  }
  func.func @transform_2(%arg0: i32) -> (i32, i32) {
    %c0_i32 = arith.constant 0 : i32
    %c0_i32_0 = arith.constant 0 : i32
    %c0_i32_1 = arith.constant 0 : i32
    return %c0_i32, %c0_i32_0 : i32, i32
  }
  func.func @transform_3(%arg0: i32) -> (i32, i32) {
    %c0_i32 = arith.constant 0 : i32
    %c0_i32_0 = arith.constant 0 : i32
    %c0_i32_1 = arith.constant 0 : i32
    return %c0_i32, %c0_i32_0 : i32, i32
  }
  func.func @transform_4(%arg0: i32) -> (i32, i32) {
    %c0_i32 = arith.constant 0 : i32
    %c0_i32_0 = arith.constant 0 : i32
    %c0_i32_1 = arith.constant 0 : i32
    return %c0_i32, %c0_i32_0 : i32, i32
  }
  func.func @transform_5(%arg0: i32) -> (i32, i32) {
    %c0_i32 = arith.constant 0 : i32
    %c0_i32_0 = arith.constant 0 : i32
    %c0_i32_1 = arith.constant 0 : i32
    return %c0_i32, %c0_i32_0 : i32, i32
  }
  func.func @transform_6(%arg0: i32) -> (i32, i32) {
    %c0_i32 = arith.constant 0 : i32
    %c0_i32_0 = arith.constant 0 : i32
    return %arg0, %c0_i32 : i32, i32
  }
}

</mosaic_0001>

<llo_original>
// kernel: tpu_custom_call.1
$region0: #{tpu_custom_call.1}
  #allocation0 [shape = 'u32[]', space=smem, size = 0x4, offset = 0x4, fixed_abs, tag = 'smem constant byte address 0x4 - core index']
  #allocation1 [shape = 'u32[144,128]{1,0:T(1,128)}', space=vmem, size = 0x12000, scoped, tag = 'internal scratch']
  %s0 = inlined_call_operand.hbm [shape: f32[8,16], index: 0, kind: input, shape index: {}]
  %s1 = inlined_call_operand.hbm [shape: f32[8,8], index: 1, kind: input, shape index: {}]
  %s2 = inlined_call_operand.hbm [shape: f32[16,128], index: 2, kind: input, shape index: {}]
  %s3 = inlined_call_operand.hbm [shape: f32[128,128], index: 3, kind: input, shape index: {}]
  %s4 = inlined_call_operand.vmem [shape: f32[8,128], index: 4, kind: input, shape index: {}]
  %s5 = inlined_call_operand.vmem [shape: f32[8,128], index: 5, kind: input, shape index: {}]
  %s6 = inlined_call_operand.hbm [shape: f32[8,128], index: 6, kind: output, shape index: {}]
  %s7 = sld [smem:[#allocation0]]
  $region50: #{tpu_custom_call.1} parent=0
    _
  %s9 = ssub.s32 1, %s7
  %s10 = scalar_select 0, %s9, %s7
  $region1: #{tpu_custom_call.1} parent=0
    #allocation2 [shape = 'u8[4096]{0}', space=vmem, size = 0x1000, scoped, tag = 'input window, operand 0, single buffered']
    #allocation3 [shape = 's32[1]{0}', space=sflag, size = 0x4, scoped, tag = 'scoped memory for tpu_custom_call.1']
    #allocation4 [shape = 's32[1]{0}', space=sflag, size = 0x4, scoped, tag = 'scoped memory for tpu_custom_call.1']
    #allocation5 [shape = 'u8[4096]{0}', space=vmem, size = 0x1000, scoped, tag = 'input window, operand 1, single buffered']
    #allocation6 [shape = 's32[1]{0}', space=sflag, size = 0x4, scoped, tag = 'scoped memory for tpu_custom_call.1']
    #allocation7 [shape = 'u8[8192]{0}', space=vmem, size = 0x2000, scoped, tag = 'input window, operand 2, single buffered']
    #allocation8 [shape = 'u8[65536]{0}', space=vmem, size = 0x10000, scoped, tag = 'input window, operand 3, single buffered']
    #allocation9 [shape = 's32[1]{0}', space=sflag, size = 0x4, scoped, tag = 'scoped memory for tpu_custom_call.1']
    #allocation10 [shape = 'u8[4096]{0}', space=vmem, size = 0x1000, scoped, tag = 'output window, operand 0, single buffered']
    %11 = vsyncpa [#allocation3], 0
    %12 = vsyncpa [#allocation6], 0
    %13 = vsyncpa [#allocation9], 0
    %14 = vsyncpa [#allocation4], 0
    // Predicated region
    $region2: #{tpu_custom_call.1} parent=1 // pred_check
      _
    $region3: #{tpu_custom_call.1} parent=1 // pred_check_branch
      %16 = sbr.rel (0) target = $region5
    $region4: #{tpu_custom_call.1} parent=1 // pred_region
      %s18 = ssub.s32 128, 128
      %19 = vsyncadd [#allocation3], %s18
      %s21 = sshll.u32 [#allocation2], 4
      %s22 = int_to_ptr.vmem [resolvable:$true] %s21
      %24 = dma.hbm_to_vmem [thread:$0]  %s0, 128, %s22, [#allocation3]
    $region5: #{tpu_custom_call.1} parent=1 // pred_fallthru
      _
    // Predicated region
    $region6: #{tpu_custom_call.1} parent=1 // pred_check
      _
    $region7: #{tpu_custom_call.1} parent=1 // pred_check_branch
      %26 = sbr.rel (0) target = $region9
    $region8: #{tpu_custom_call.1} parent=1 // pred_region
      %s28 = ssub.s32 128, 128
      %29 = vsyncadd [#allocation6], %s28
      %s31 = sshll.u32 [#allocation5], 4
      %s32 = int_to_ptr.vmem [resolvable:$true] %s31
      %34 = dma.hbm_to_vmem [thread:$0]  %s1, 128, %s32, [#allocation6]
    $region9: #{tpu_custom_call.1} parent=1 // pred_fallthru
      _
    // Predicated region
    $region10: #{tpu_custom_call.1} parent=1 // pred_check
      _
    $region11: #{tpu_custom_call.1} parent=1 // pred_check_branch
      %36 = sbr.rel (0) target = $region13
    $region12: #{tpu_custom_call.1} parent=1 // pred_region
      %s38 = ssub.s32 256, 256
      %39 = vsyncadd [#allocation6], %s38
      %s40 = sshll.u32 [#allocation7], 4
      %s41 = int_to_ptr.vmem [resolvable:$true] %s40
      %46 = dma.hbm_to_vmem [thread:$0]  %s2, 256, %s41, [#allocation6], 128, 128, 8
    $region13: #{tpu_custom_call.1} parent=1 // pred_fallthru
      _
    // Predicated region
    $region14: #{tpu_custom_call.1} parent=1 // pred_check
      _
    $region15: #{tpu_custom_call.1} parent=1 // pred_check_branch
      %48 = sbr.rel (0) target = $region17
    $region16: #{tpu_custom_call.1} parent=1 // pred_region
      %s50 = ssub.s32 2048, 2048
      %51 = vsyncadd [#allocation9], %s50
      %s52 = sshll.u32 [#allocation8], 4
      %s53 = int_to_ptr.vmem [resolvable:$true] %s52
      %58 = dma.hbm_to_vmem [thread:$0]  %s3, 2048, %s53, [#allocation9], 128, 128, 8
    $region17: #{tpu_custom_call.1} parent=1 // pred_fallthru
      _
    // Predicated region
    $region18: #{tpu_custom_call.1} parent=1 // pred_check
      _
    $region19: #{tpu_custom_call.1} parent=1 // pred_check_branch
      %60 = sbr.rel (0) target = $region21
    $region20: #{tpu_custom_call.1} parent=1 // pred_region
      _
    $region21: #{tpu_custom_call.1} parent=1 // pred_fallthru
      _
    // Predicated region
    $region22: #{tpu_custom_call.1} parent=1 // pred_check
      _
    $region23: #{tpu_custom_call.1} parent=1 // pred_check_branch
      %62 = sbr.rel (0) target = $region25
    $region24: #{tpu_custom_call.1} parent=1 // pred_region
      _
    $region25: #{tpu_custom_call.1} parent=1 // pred_fallthru
      _
    // Predicated region
    $region26: #{tpu_custom_call.1} parent=1 // pred_check
      _
    $region27: #{tpu_custom_call.1} parent=1 // pred_check_branch
      %64 = sbr.rel (0) target = $region29
    $region28: #{tpu_custom_call.1} parent=1 // pred_region
      %65 = dma.done [#allocation3], 128
    $region29: #{tpu_custom_call.1} parent=1 // pred_fallthru
      _
    // Predicated region
    $region30: #{tpu_custom_call.1} parent=1 // pred_check
      _
    $region31: #{tpu_custom_call.1} parent=1 // pred_check_branch
      %67 = sbr.rel (0) target = $region33
    $region32: #{tpu_custom_call.1} parent=1 // pred_region
      %68 = dma.done [#allocation6], 128
    $region33: #{tpu_custom_call.1} parent=1 // pred_fallthru
      _
    // Predicated region
    $region34: #{tpu_custom_call.1} parent=1 // pred_check
      _
    $region35: #{tpu_custom_call.1} parent=1 // pred_check_branch
      %70 = sbr.rel (0) target = $region37
    $region36: #{tpu_custom_call.1} parent=1 // pred_region
      %71 = dma.done [#allocation6], 256
    $region37: #{tpu_custom_call.1} parent=1 // pred_fallthru
      _
    // Predicated region
    $region38: #{tpu_custom_call.1} parent=1 // pred_check
      _
    $region39: #{tpu_custom_call.1} parent=1 // pred_check_branch
      %73 = sbr.rel (0) target = $region41
    $region40: #{tpu_custom_call.1} parent=1 // pred_region
      %74 = dma.done [#allocation9], 2048
    $region41: #{tpu_custom_call.1} parent=1 // pred_fallthru
      _
    %v75 = vld [vmem:[#allocation2] sm:$0xff]
    %v76 = vld [vmem:[#allocation5] sm:$0xff]
    %v77 = vld [vmem:[%s5] sm:$0xff]
    %v78 = vld [vmem:[#allocation7] sm:$0xff]
    %v79 = vld [vmem:[#allocation7 + $0x8] sm:$0xff]
    %v80 = vlaneseq
    %v81 = vshrl.u32 %v80, 7
    %v82 = vsub.s32 0, %v81
    %v83 = vrot.slane %v77, %v82
    %vm84 = vcmask 130048
    %v86 = vsel %vm84, %v75, 0
    %88 = vmatprep.subr.mxu0 0.0
    %89 = vmatpush1.msra.mxu0 %v78
    %90 = vmatprep.subr.mxu0 0.0
    %91 = vmatpush1.msra.mxu0 %v79
    %92 = vmatprep.subr.mxu0 0.0
    %93 = vmatpush1.msra.mxu0 0.0
    %94 = vmatprep.subr.mxu0 0.0
    %95 = vmatpush1.msra.mxu0 0.0
    %96 = vmatprep.subr.mxu0 0.0
    %97 = vmatpush1.msra.mxu0 0.0
    %98 = vmatprep.subr.mxu0 0.0
    %99 = vmatpush1.msra.mxu0 0.0
    %100 = vmatprep.subr.mxu0 0.0
    %101 = vmatpush1.msra.mxu0 0.0
    %102 = vmatprep.subr.mxu0 0.0
    %103 = vmatpush1.msra.mxu0 0.0
    %104 = vmatprep.subr.mxu0 0.0
    %105 = vmatpush1.msra.mxu0 0.0
    %106 = vmatprep.subr.mxu0 0.0
    %107 = vmatpush1.msra.mxu0 0.0
    %108 = vmatprep.subr.mxu0 0.0
    %109 = vmatpush1.msra.mxu0 0.0
    %110 = vmatprep.subr.mxu0 0.0
    %111 = vmatpush1.msra.mxu0 0.0
    %112 = vmatprep.subr.mxu0 0.0
    %113 = vmatpush1.msra.mxu0 0.0
    %114 = vmatprep.subr.mxu0 0.0
    %115 = vmatpush1.msra.mxu0 0.0
    %116 = vmatprep.subr.mxu0 0.0
    %117 = vmatpush1.msra.mxu0 0.0
    %118 = vmatprep.subr.mxu0 0.0
    %119 = vmatpush1.msra.mxu0 0.0
    %120 = vmatprep.subr.mxu0 0.0
    %121 = vmatpush1.msra.mxu0 0.0
    %122 = vmatprep.subr.mxu0 0.0
    %123 = vmatpush1.msra.mxu0 0.0
    %124 = vmatprep.subr.mxu0 0.0
    %125 = vmatpush1.msra.mxu0 0.0
    %126 = vmatprep.subr.mxu0 0.0
    %127 = vmatpush1.msra.mxu0 0.0
    %128 = vmatprep.subr.mxu0 0.0
    %129 = vmatpush1.msra.mxu0 0.0
    %130 = vmatprep.subr.mxu0 0.0
    %131 = vmatpush1.msra.mxu0 0.0
    %132 = vmatprep.subr.mxu0 0.0
    %133 = vmatpush1.msra.mxu0 0.0
    %134 = vmatprep.subr.mxu0 0.0
    %135 = vmatpush1.msra.mxu0 0.0
    %136 = vmatprep.subr.mxu0 0.0
    %137 = vmatpush1.msra.mxu0 0.0
    %138 = vmatprep.subr.mxu0 0.0
    %139 = vmatpush1.msra.mxu0 0.0
    %140 = vmatprep.subr.mxu0 0.0
    %141 = vmatpush1.msra.mxu0 0.0
    %142 = vmatprep.subr.mxu0 0.0
    %143 = vmatpush1.msra.mxu0 0.0
    %144 = vmatprep.subr.mxu0 0.0
    %145 = vmatpush1.msra.mxu0 0.0
    %146 = vmatprep.subr.mxu0 0.0
    %147 = vmatpush1.msra.mxu0 0.0
    %148 = vmatprep.subr.mxu0 0.0
    %149 = vmatpush1.msra.mxu0 0.0
    %150 = vmatprep.subr.mxu0 0.0
    %151 = vmatpush1.msra.mxu0 0.0
    %152 = vmatprep.mubr.f32.mxu0 0.0
    %153 = vmatmul.mubr.f32.gmra.mrb[0].mxu0 %v86
    %v154 = vpop.f32.mrb[0].mxu0
    %v155 = vadd.f32 %v83, %v154
    %v156 = vpop.f32.mrb[0].mxu0
    %157 = vdwg.mxu0
    %v158 = vtanh.pop %v155
    %v159 = vld [vmem:[#allocation8] sm:$0xff]
    %v160 = vld [vmem:[#allocation8 + $0x8] sm:$0xff]
    %v161 = vld [vmem:[#allocation8 + $0x10] sm:$0xff]
    %v162 = vld [vmem:[#allocation8 + $0x18] sm:$0xff]
    %v163 = vld [vmem:[#allocation8 + $0x20] sm:$0xff]
    %v164 = vld [vmem:[#allocation8 + $0x28] sm:$0xff]
    %v165 = vld [vmem:[#allocation8 + $0x30] sm:$0xff]
    %v166 = vld [vmem:[#allocation8 + $0x38] sm:$0xff]
    %v167 = vld [vmem:[#allocation8 + $0x40] sm:$0xff]
    %v168 = vld [vmem:[#allocation8 + $0x48] sm:$0xff]
    %v169 = vld [vmem:[#allocation8 + $0x50] sm:$0xff]
    %v170 = vld [vmem:[#allocation8 + $0x58] sm:$0xff]
    %v171 = vld [vmem:[#allocation8 + $0x60] sm:$0xff]
    %v172 = vld [vmem:[#allocation8 + $0x68] sm:$0xff]
    %v173 = vld [vmem:[#allocation8 + $0x70] sm:$0xff]
    %v174 = vld [vmem:[#allocation8 + $0x78] sm:$0xff]
    %v175 = vlaneseq
    %v176 = vshrl.u32 %v175, 7
    %v177 = vsub.s32 1, %v176
    %v178 = vrot.slane %v77, %v177
    %179 = vmatprep.subr.mxu0 0.0
    %180 = vmatpush1.msra.mxu0 %v159
    %181 = vmatprep.subr.mxu0 0.0
    %182 = vmatpush1.msra.mxu0 %v160
    %183 = vmatprep.subr.mxu0 0.0
    %184 = vmatpush1.msra.mxu0 %v161
    %185 = vmatprep.subr.mxu0 0.0
    %186 = vmatpush1.msra.mxu0 %v162
    %187 = vmatprep.subr.mxu0 0.0
    %188 = vmatpush1.msra.mxu0 %v163
    %189 = vmatprep.subr.mxu0 0.0
    %190 = vmatpush1.msra.mxu0 %v164
    %191 = vmatprep.subr.mxu0 0.0
    %192 = vmatpush1.msra.mxu0 %v165
    %193 = vmatprep.subr.mxu0 0.0
    %194 = vmatpush1.msra.mxu0 %v166
    %195 = vmatprep.subr.mxu0 0.0
    %196 = vmatpush1.msra.mxu0 %v167
    %197 = vmatprep.subr.mxu0 0.0
    %198 = vmatpush1.msra.mxu0 %v168
    %199 = vmatprep.subr.mxu0 0.0
    %200 = vmatpush1.msra.mxu0 %v169
    %201 = vmatprep.subr.mxu0 0.0
    %202 = vmatpush1.msra.mxu0 %v170
    %203 = vmatprep.subr.mxu0 0.0
    %204 = vmatpush1.msra.mxu0 %v171
    %205 = vmatprep.subr.mxu0 0.0
    %206 = vmatpush1.msra.mxu0 %v172
    %207 = vmatprep.subr.mxu0 0.0
    %208 = vmatpush1.msra.mxu0 %v173
    %209 = vmatprep.subr.mxu0 0.0
    %210 = vmatpush1.msra.mxu0 %v174
    %211 = vmatprep.subr.mxu0 0.0
    %212 = vmatpush1.msra.mxu0 0.0
    %213 = vmatprep.subr.mxu0 0.0
    %214 = vmatpush1.msra.mxu0 0.0
    %215 = vmatprep.subr.mxu0 0.0
    %216 = vmatpush1.msra.mxu0 0.0
    %217 = vmatprep.subr.mxu0 0.0
    %218 = vmatpush1.msra.mxu0 0.0
    %219 = vmatprep.subr.mxu0 0.0
    %220 = vmatpush1.msra.mxu0 0.0
    %221 = vmatprep.subr.mxu0 0.0
    %222 = vmatpush1.msra.mxu0 0.0
    %223 = vmatprep.subr.mxu0 0.0
    %224 = vmatpush1.msra.mxu0 0.0
    %225 = vmatprep.subr.mxu0 0.0
    %226 = vmatpush1.msra.mxu0 0.0
    %227 = vmatprep.subr.mxu0 0.0
    %228 = vmatpush1.msra.mxu0 0.0
    %229 = vmatprep.subr.mxu0 0.0
    %230 = vmatpush1.msra.mxu0 0.0
    %231 = vmatprep.subr.mxu0 0.0
    %232 = vmatpush1.msra.mxu0 0.0
    %233 = vmatprep.subr.mxu0 0.0
    %234 = vmatpush1.msra.mxu0 0.0
    %235 = vmatprep.subr.mxu0 0.0
    %236 = vmatpush1.msra.mxu0 0.0
    %237 = vmatprep.subr.mxu0 0.0
    %238 = vmatpush1.msra.mxu0 0.0
    %239 = vmatprep.subr.mxu0 0.0
    %240 = vmatpush1.msra.mxu0 0.0
    %241 = vmatprep.subr.mxu0 0.0
    %242 = vmatpush1.msra.mxu0 0.0
    %243 = vmatprep.mubr.f32.mxu0 0.0
    %244 = vmatmul.mubr.f32.gmra.mrb[0].mxu0 %v158
    %v245 = vpop.f32.mrb[0].mxu0
    %v246 = vadd.f32 %v178, %v245
    %v247 = vpop.f32.mrb[0].mxu0
    %248 = vdwg.mxu0
    %v249 = vmul.f32 %v246, 0.5
    %v250 = vmul.f32 %v249, 1.442695
    %v251 = vpow.pop %v250
    %253 = vrot.lane.b32.xlu0 %v76, 8
    %v254 = vpop.permute.xlu0 %253
    %v256 = vmul.f32 %v251, %v254
    %258 = vrot.lane.b32.xlu0 %v256, 120
    %v259 = vpop.permute.xlu0 %258
    %v261 = vadd.f32 %v246, %v259
    %v262 = vld [vmem:[%s4] sm:$0xff]
    %v263 = vlaneseq
    %v264 = vshrl.u32 %v263, 7
    %v265 = vsub.s32 2, %v264
    %v266 = vrot.slane %v77, %v265
    %vm267 = vcmask 64512
    %v269 = vsel %vm267, %v261, 0
    %271 = vmatprep.subr.mxu0 0.0
    %272 = vmatpush1.msra.mxu0 %v262
    %273 = vmatprep.subr.mxu0 0.0
    %274 = vmatpush1.msra.mxu0 0.0
    %275 = vmatprep.subr.mxu0 0.0
    %276 = vmatpush1.msra.mxu0 0.0
    %277 = vmatprep.subr.mxu0 0.0
    %278 = vmatpush1.msra.mxu0 0.0
    %279 = vmatprep.subr.mxu0 0.0
    %280 = vmatpush1.msra.mxu0 0.0
    %281 = vmatprep.subr.mxu0 0.0
    %282 = vmatpush1.msra.mxu0 0.0
    %283 = vmatprep.subr.mxu0 0.0
    %284 = vmatpush1.msra.mxu0 0.0
    %285 = vmatprep.subr.mxu0 0.0
    %286 = vmatpush1.msra.mxu0 0.0
    %287 = vmatprep.subr.mxu0 0.0
    %288 = vmatpush1.msra.mxu0 0.0
    %289 = vmatprep.subr.mxu0 0.0
    %290 = vmatpush1.msra.mxu0 0.0
    %291 = vmatprep.subr.mxu0 0.0
    %292 = vmatpush1.msra.mxu0 0.0
    %293 = vmatprep.subr.mxu0 0.0
    %294 = vmatpush1.msra.mxu0 0.0
    %295 = vmatprep.subr.mxu0 0.0
    %296 = vmatpush1.msra.mxu0 0.0
    %297 = vmatprep.subr.mxu0 0.0
    %298 = vmatpush1.msra.mxu0 0.0
    %299 = vmatprep.subr.mxu0 0.0
    %300 = vmatpush1.msra.mxu0 0.0
    %301 = vmatprep.subr.mxu0 0.0
    %302 = vmatpush1.msra.mxu0 0.0
    %303 = vmatprep.subr.mxu0 0.0
    %304 = vmatpush1.msra.mxu0 0.0
    %305 = vmatprep.subr.mxu0 0.0
    %306 = vmatpush1.msra.mxu0 0.0
    %307 = vmatprep.subr.mxu0 0.0
    %308 = vmatpush1.msra.mxu0 0.0
    %309 = vmatprep.subr.mxu0 0.0
    %310 = vmatpush1.msra.mxu0 0.0
    %311 = vmatprep.subr.mxu0 0.0
    %312 = vmatpush1.msra.mxu0 0.0
    %313 = vmatprep.subr.mxu0 0.0
    %314 = vmatpush1.msra.mxu0 0.0
    %315 = vmatprep.subr.mxu0 0.0
    %316 = vmatpush1.msra.mxu0 0.0
    %317 = vmatprep.subr.mxu0 0.0
    %318 = vmatpush1.msra.mxu0 0.0
    %319 = vmatprep.subr.mxu0 0.0
    %320 = vmatpush1.msra.mxu0 0.0
    %321 = vmatprep.subr.mxu0 0.0
    %322 = vmatpush1.msra.mxu0 0.0
    %323 = vmatprep.subr.mxu0 0.0
    %324 = vmatpush1.msra.mxu0 0.0
    %325 = vmatprep.subr.mxu0 0.0
    %326 = vmatpush1.msra.mxu0 0.0
    %327 = vmatprep.subr.mxu0 0.0
    %328 = vmatpush1.msra.mxu0 0.0
    %329 = vmatprep.subr.mxu0 0.0
    %330 = vmatpush1.msra.mxu0 0.0
    %331 = vmatprep.subr.mxu0 0.0
    %332 = vmatpush1.msra.mxu0 0.0
    %333 = vmatprep.subr.mxu0 0.0
    %334 = vmatpush1.msra.mxu0 0.0
    %335 = vmatprep.mubr.f32.mxu0 0.0
    %336 = vmatmul.mubr.f32.gmra.mrb[0].mxu0 %v269
    %v337 = vpop.f32.mrb[0].mxu0
    %v338 = vadd.f32 %v266, %v337
    %v339 = vpop.f32.mrb[0].mxu0
    %340 = vdwg.mxu0
    %v341 = vtanh.pop %v338
    %v342 = vlaneseq
    %v343 = vshrl.u32 %v342, 7
    %v344 = vsub.s32 3, %v343
    %v345 = vrot.slane %v77, %v344
    %v346 = vmul.f32 %v341, %v345
    %347 = vadd.xlane.f32.xlu0 %v346
    %v348 = vpop.xlane.xlu0 %347
    %v349 = vlaneseq
    %v350 = vshrl.u32 %v349, 7
    %v351 = vsub.s32 4, %v350
    %v352 = vrot.slane %v77, %v351
    %v353 = vadd.f32 %v348, %v352
    %v354 = vxor.u32 %v353, 2147483648
    %v355 = vmul.f32 %v354, 1.442695
    %v356 = vpow.pop %v355
    %v357 = vadd.f32 %v356, 1.0
    %v358 = vrcp.pop %v357
    %v359 = vmul.f32 1.0, %v358
    %v360 = vlaneseq
    %v361 = vand.u32 %v360, 127
    %vm362 = vcmp.eq.s32.totalorder %v361, 16
    %364 = vset.pattern.permute.xlu0 0
    %365 = vperm.xlu0 %364, %v359
    %v366 = vpop.permute.xlu0 %365
    %v368 = vsel %vm362, %v366, %v246
    %369 = vst [vmem:[#allocation10] sm:$0xff] %v368
    // Predicated region
    $region42: #{tpu_custom_call.1} parent=1 // pred_check
      _
    $region43: #{tpu_custom_call.1} parent=1 // pred_check_branch
      %371 = sbr.rel (0) target = $region45
    $region44: #{tpu_custom_call.1} parent=1 // pred_region
      %s373 = ssub.s32 128, 128
      %374 = vsyncadd [#allocation4], %s373
      %s376 = sshll.u32 [#allocation10], 4
      %s377 = int_to_ptr.vmem [resolvable:$true] %s376
      %379 = dma.vmem_to_hbm [thread:$0]  %s377, 128, %s6, [#allocation4]
    $region45: #{tpu_custom_call.1} parent=1 // pred_fallthru
      _
    // Predicated region
    $region46: #{tpu_custom_call.1} parent=1 // pred_check
      _
    $region47: #{tpu_custom_call.1} parent=1 // pred_check_branch
      %381 = sbr.rel (0) target = $region49
    $region48: #{tpu_custom_call.1} parent=1 // pred_region
      %382 = dma.done [#allocation4], 128
    $region49: #{tpu_custom_call.1} parent=1 // pred_fallthru
      _
    %383 = vsyncpa [#allocation3], 1
    %384 = vsyncpa [#allocation6], 1
    %385 = vsyncpa [#allocation9], 1
    %386 = vsyncpa [#allocation4], 1

</llo_original>
